<compile_context>
chip_gen: v7x
topology: tpu7x:2x2x1
jax: 0.10.0
libtpu: 0.0.40
codegen_flags: <defaults>
</compile_context>

<pallas_src>
import jax
import jax.numpy as jnp
from jax.experimental import pallas as pl
from jax.experimental.pallas import tpu as pltpu

HIDDEN = 256
HEAD_PAD = 128        # lane-dense output width; q1/q2/v occupy lanes 0,1,2
MAX_BATCH_TILE = 512  # rows per grid step


def _round_up(x, m):
    return ((x + m - 1) // m) * m


def _cdiv(a, b):
    return -(-a // b)


def _tensorcores_per_chip():
    """2 on v7x (megacore grid sharding), 1 on v5e/v6e. Safe fallback: 1."""
    try:
        kind = jax.devices()[0].device_kind.lower()
        return 2 if "v7" in kind else 1
    except Exception:  # pragma: no cover - defensive
        return 1


def _choose_tiling(B):
    num_tiles = _cdiv(B, MAX_BATCH_TILE)
    # v7x: split a single-tile medium batch across both TensorCores.
    if num_tiles == 1 and B >= 64 and _tensorcores_per_chip() >= 2:
        num_tiles = 2
    tile = _round_up(_cdiv(B, num_tiles), 8)
    return tile, num_tiles


def _critic_kernel(obs_ref, act_ref,
                   w1o_ref, w1a_ref, b1_ref,
                   w2_q1_ref, b2_q1_ref,
                   w2_q2_ref, b2_q2_ref,
                   w2_v_ref, b2_v_ref,
                   w3_q1_ref, w3_q2_ref, w3_v_ref, b3_ref,
                   o_ref):
    """Fused q1/q2/v forward for one (tile, *) batch block."""
    # Inputs stay f32 in HBM/VMEM (tiny); cast to bf16 for the MXU.
    obs = obs_ref[...].astype(jnp.bfloat16)
    act = act_ref[...].astype(jnp.bfloat16)

    # ---- Layer 1: two merged dots (obs -> 3 nets, act -> 2 nets) ----------
    # pre_obs: (tile, 3*H) = [q1 | q2 | v];  pre_act: (tile, 2*H) = [q1 | q2]
    pre_obs = (jnp.dot(obs, w1o_ref[...], preferred_element_type=jnp.float32)
               + b1_ref[...])
    pre_act = jnp.dot(act, w1a_ref[...], preferred_element_type=jnp.float32)

    pre_q1 = pre_obs[:, 0 * HIDDEN:1 * HIDDEN] + pre_act[:, 0 * HIDDEN:1 * HIDDEN]
    pre_q2 = pre_obs[:, 1 * HIDDEN:2 * HIDDEN] + pre_act[:, 1 * HIDDEN:2 * HIDDEN]
    pre_v = pre_obs[:, 2 * HIDDEN:3 * HIDDEN]

    # ---- Layer 2 (+ ReLUs): full-width 256x256 bf16 MXU dots --------------
    def trunk(pre, w2_ref, b2_ref):
        h1 = jnp.maximum(pre, 0.0).astype(jnp.bfloat16)
        h2 = jnp.dot(h1, w2_ref[...], preferred_element_type=jnp.float32) + b2_ref[...]
        return jnp.maximum(h2, 0.0)

    h2_q1 = trunk(pre_q1, w2_q1_ref, b2_q1_ref)
    h2_q2 = trunk(pre_q2, w2_q2_ref, b2_q2_ref)
    h2_v = trunk(pre_v, w2_v_ref, b2_v_ref)

    # ---- Heads (256 -> 1): VPU multiply + XLU lane-reduce (off the MXU) ----
    def head(h2, w3_ref):
        return jnp.sum(h2 * w3_ref[...], axis=-1, keepdims=True)  # (tile, 1)

    q1 = head(h2_q1, w3_q1_ref)
    q2 = head(h2_q2, w3_q2_ref)
    v = head(h2_v, w3_v_ref)

    # Lane-dense assembly: q1/q2/v into lanes 0/1/2 of one (tile, 128) block
    # -> unmasked full-width stores.
    lane = jax.lax.broadcasted_iota(jnp.int32, o_ref.shape, 1)
    out = jnp.where(lane == 0, q1,
                    jnp.where(lane == 1, q2,
                              jnp.where(lane == 2, v, 0.0)))
    o_ref[...] = (out + b3_ref[...]).astype(o_ref.dtype)


def _critic_pallas(obs, act, kparams, *, tile):
    """obs/act padded to (Bp, op)/(Bp, ap) f32. Returns (Bp, HEAD_PAD) f32."""
    Bp, op = obs.shape
    ap = act.shape[1]
    grid = (Bp // tile,)

    def rep(shape):
        # Weight/bias block: full extent, block index never changes -> the
        # block stays resident in VMEM across the whole batch loop.
        return pl.BlockSpec(shape, lambda i: (0, 0))

    in_specs = [
        pl.BlockSpec((tile, op), lambda i: (i, 0)),   # obs
        pl.BlockSpec((tile, ap), lambda i: (i, 0)),   # act
        rep((op, 3 * HIDDEN)),                        # stacked W1_obs (q1,q2,v)
        rep((ap, 2 * HIDDEN)),                        # stacked W1_act (q1,q2)
        rep((1, 3 * HIDDEN)),                         # stacked b1
        rep((HIDDEN, HIDDEN)), rep((1, HIDDEN)),      # q1 layer 2
        rep((HIDDEN, HIDDEN)), rep((1, HIDDEN)),      # q2 layer 2
        rep((HIDDEN, HIDDEN)), rep((1, HIDDEN)),      # v  layer 2
        rep((1, HIDDEN)), rep((1, HIDDEN)), rep((1, HIDDEN)),   # head rows
        rep((1, HEAD_PAD)),                           # lane-dense head bias
    ]
    out_spec = pl.BlockSpec((tile, HEAD_PAD), lambda i: (i, 0))

    flops = (2 * Bp * (op * 3 * HIDDEN + ap * 2 * HIDDEN)     # layer 1
             + 2 * Bp * 3 * HIDDEN * HIDDEN                   # layer 2
             + Bp * 3 * 2 * HIDDEN)                           # heads (VPU/XLU)
    bytes_accessed = (4 * (int(obs.size) + int(act.size) + Bp * HEAD_PAD)
                      + sum(int(w.size) * w.dtype.itemsize for w in kparams))

    return pl.pallas_call(
        _critic_kernel,
        out_shape=jax.ShapeDtypeStruct((Bp, HEAD_PAD), jnp.float32),
        grid_spec=pltpu.PrefetchScalarGridSpec(
            num_scalar_prefetch=0,
            grid=grid,
            in_specs=in_specs,
            out_specs=out_spec,
        ),
        compiler_params=pltpu.CompilerParams(
            dimension_semantics=("parallel",)),
        cost_estimate=pl.CostEstimate(
            flops=flops, transcendentals=0, bytes_accessed=bytes_accessed),
    )(obs, act, *kparams)


def _prep_kernel_params(params, obs_dim, act_dim, op, ap):
    """Convert module params into the fused-kernel layout (stack/pad/bf16)."""
    w1_q1, b1_q1, w2_q1, b2_q1, w3_q1, b3_q1 = params["q1"]
    w1_q2, b1_q2, w2_q2, b2_q2, w3_q2, b3_q2 = params["q2"]
    w1_v, b1_v, w2_v, b2_v, w3_v, b3_v = params["v"]

    def pad_rows(w, rows):
        return jnp.pad(w, ((0, rows - w.shape[0]), (0, 0)))

    # Layer 1 merged along N: one obs-dot (op, 3H) and one act-dot (ap, 2H).
    # Zero-padded feature rows pair with zero-padded input columns -> exact.
    w1o = jnp.concatenate([w1_q1[:obs_dim], w1_q2[:obs_dim], w1_v], axis=1)
    w1a = jnp.concatenate([w1_q1[obs_dim:], w1_q2[obs_dim:]], axis=1)
    w1o = pad_rows(w1o, op).astype(jnp.bfloat16)
    w1a = pad_rows(w1a, ap).astype(jnp.bfloat16)
    b1 = jnp.concatenate([b1_q1, b1_q2, b1_v], axis=1)          # (1, 3H) f32

    # Heads: per-net (1, 256) f32 rows (VPU multiply + lane-reduce in-kernel)
    # and one lane-dense (1, 128) bias with lanes 0/1/2 = b3_q1/b3_q2/b3_v.
    w3q1 = w3_q1.reshape(1, HIDDEN)
    w3q2 = w3_q2.reshape(1, HIDDEN)
    w3v = w3_v.reshape(1, HIDDEN)
    b3 = jnp.zeros((1, HEAD_PAD), jnp.float32)
    b3 = b3.at[0, 0].set(b3_q1[0, 0]).at[0, 1].set(b3_q2[0, 0]).at[0, 2].set(b3_v[0, 0])

    return (w1o, w1a, b1,
            w2_q1.astype(jnp.bfloat16), b2_q1,
            w2_q2.astype(jnp.bfloat16), b2_q2,
            w2_v.astype(jnp.bfloat16), b2_v,
            w3q1, w3q2, w3v, b3)


def _init_linear(key, in_dim, out_dim):
    """PyTorch-style uniform(-1/sqrt(fan_in), 1/sqrt(fan_in)) init.

    Weight returned as (in_dim, out_dim) so the kernel computes x @ W;
    bias as (1, out_dim) (2-D for TPU layout friendliness).
    """
    kw, kb = jax.random.split(key)
    bound = 1.0 / (in_dim ** 0.5)
    w = jax.random.uniform(kw, (in_dim, out_dim), jnp.float32, -bound, bound)
    b = jax.random.uniform(kb, (1, out_dim), jnp.float32, -bound, bound)
    return w, b


def init_critic_params(key, obs_dim, act_dim):
    keys = jax.random.split(key, 9)
    params = {}
    for name, in_dim, ks in (("q1", obs_dim + act_dim, keys[0:3]),
                             ("q2", obs_dim + act_dim, keys[3:6]),
                             ("v", obs_dim, keys[6:9])):
        w1, b1 = _init_linear(ks[0], in_dim, HIDDEN)
        w2, b2 = _init_linear(ks[1], HIDDEN, HIDDEN)
        w3, b3 = _init_linear(ks[2], HIDDEN, 1)
        params[name] = (w1, b1, w2, b2, w3, b3)
    return params


@jax.jit
def critic_forward(params, obs, act):
    """Equivalent of Critic.forward: returns (q1(xu), q2(xu), v(obs))."""
    B, obs_dim = obs.shape
    act_dim = act.shape[1]
    op = _round_up(obs_dim, 8)
    ap = _round_up(act_dim, 8)
    tile, num_tiles = _choose_tiling(B)
    Bp = tile * num_tiles

    # Single fused pad: batch rows to Bp (<= tile-1 extra) and features to
    # sublane multiples (zero features x zero weight rows -> exact math).
    obs_p = jnp.pad(obs, ((0, Bp - B), (0, op - obs_dim)))
    act_p = jnp.pad(act, ((0, Bp - B), (0, ap - act_dim)))
    kparams = _prep_kernel_params(params, obs_dim, act_dim, op, ap)

    out = _critic_pallas(obs_p, act_p, kparams, tile=tile)   # (Bp, 128)
    q1 = out[:B, 0:1]
    q2 = out[:B, 1:2]
    v = out[:B, 2:3]
    return q1, q2, v


def _reference_forward(params, obs, act):
    """Pure-JAX reference (f32, highest precision) for correctness checking."""
    hi = jax.lax.Precision.HIGHEST

    def mlp(x, p):
        w1, b1, w2, b2, w3, b3 = p
        h1 = jnp.maximum(jnp.dot(x, w1, precision=hi) + b1, 0.0)
        h2 = jnp.maximum(jnp.dot(h1, w2, precision=hi) + b2, 0.0)
        return jnp.dot(h2, w3, precision=hi) + b3

    xu = jnp.concatenate([obs, act], axis=-1)
    return mlp(xu, params["q1"]), mlp(xu, params["q2"]), mlp(obs, params["v"])


def _check(params, obs, act, atol=3e-2, rtol=3e-2):
    # Tolerance loosened vs. the pure-f32 version: matmul operands are bf16
    # (f32 accumulation), so ~1e-2 absolute deviation from the f32 reference
    # is expected and acceptable for this RL critic.
    q1, q2, v = critic_forward(params, obs, act)
    jax.block_until_ready((q1, q2, v))
    rq1, rq2, rv = _reference_forward(params, obs, act)
    B = obs.shape[0]
    assert q1.shape == (B, 1) and q2.shape == (B, 1) and v.shape == (B, 1)
    assert jnp.allclose(q1, rq1, atol=atol, rtol=rtol)
    assert jnp.allclose(q2, rq2, atol=atol, rtol=rtol)
    assert jnp.allclose(v, rv, atol=atol, rtol=rtol)


if __name__ == "__main__":
    key = jax.random.PRNGKey(0)
    k_params, k_obs, k_act = jax.random.split(key, 3)

    obs_dim, act_dim = 17, 7
    params = init_critic_params(k_params, obs_dim, act_dim)

    # Small batch: single (or two on v7x) grid step(s).
    obs_s = jax.random.normal(k_obs, (8, obs_dim), jnp.float32)
    act_s = jax.random.normal(k_act, (8, act_dim), jnp.float32)
    _check(params, obs_s, act_s)

    # Larger, non-multiple batch: exercises tiling + minimal batch padding
    # (300 -> 304 rows, not 512).
    obs_l = jax.random.normal(k_obs, (300, obs_dim), jnp.float32)
    act_l = jax.random.normal(k_act, (300, act_dim), jnp.float32)
    _check(params, obs_l, act_l)

    print("KERNEL_OK")
</pallas_src>

<mosaic_0001>
module attributes {stable_mosaic.version = 11 : i64} {
  func.func @_critic_kernel(%arg0: i32, %arg1: memref<8x24xf32, #tpu.memory_space<vmem>>, %arg2: memref<8x8xf32, #tpu.memory_space<vmem>>, %arg3: memref<24x768xbf16, #tpu.memory_space<vmem>>, %arg4: memref<8x512xbf16, #tpu.memory_space<vmem>>, %arg5: memref<1x768xf32, #tpu.memory_space<vmem>>, %arg6: memref<256x256xbf16, #tpu.memory_space<vmem>>, %arg7: memref<1x256xf32, #tpu.memory_space<vmem>>, %arg8: memref<256x256xbf16, #tpu.memory_space<vmem>>, %arg9: memref<1x256xf32, #tpu.memory_space<vmem>>, %arg10: memref<256x256xbf16, #tpu.memory_space<vmem>>, %arg11: memref<1x256xf32, #tpu.memory_space<vmem>>, %arg12: memref<1x256xf32, #tpu.memory_space<vmem>>, %arg13: memref<1x256xf32, #tpu.memory_space<vmem>>, %arg14: memref<1x256xf32, #tpu.memory_space<vmem>>, %arg15: memref<1x128xf32, #tpu.memory_space<vmem>>, %arg16: memref<8x128xf32, #tpu.memory_space<vmem>>) attributes {dimension_semantics = [#tpu.dimension_semantics<parallel>], iteration_bounds = array<i64: 1>, scalar_prefetch = 0 : i64, scratch_operands = 0 : i64, tpu.core_type = #tpu.core_type<tc>, window_params = [{transform_indices = @transform_0, window_bounds = array<i64: 8, 24>}, {transform_indices = @transform_1, window_bounds = array<i64: 8, 8>}, {pipeline_mode = #tpu.pipeline_mode<synchronous>, transform_indices = @transform_2, window_bounds = array<i64: 24, 768>}, {pipeline_mode = #tpu.pipeline_mode<synchronous>, transform_indices = @transform_3, window_bounds = array<i64: 8, 512>}, {pipeline_mode = #tpu.pipeline_mode<synchronous>, transform_indices = @transform_4, window_bounds = array<i64: 1, 768>}, {pipeline_mode = #tpu.pipeline_mode<synchronous>, transform_indices = @transform_5, window_bounds = array<i64: 256, 256>}, {pipeline_mode = #tpu.pipeline_mode<synchronous>, transform_indices = @transform_6, window_bounds = array<i64: 1, 256>}, {pipeline_mode = #tpu.pipeline_mode<synchronous>, transform_indices = @transform_7, window_bounds = array<i64: 256, 256>}, {pipeline_mode = #tpu.pipeline_mode<synchronous>, transform_indices = @transform_8, window_bounds = array<i64: 1, 256>}, {pipeline_mode = #tpu.pipeline_mode<synchronous>, transform_indices = @transform_9, window_bounds = array<i64: 256, 256>}, {pipeline_mode = #tpu.pipeline_mode<synchronous>, transform_indices = @transform_10, window_bounds = array<i64: 1, 256>}, {pipeline_mode = #tpu.pipeline_mode<synchronous>, transform_indices = @transform_11, window_bounds = array<i64: 1, 256>}, {pipeline_mode = #tpu.pipeline_mode<synchronous>, transform_indices = @transform_12, window_bounds = array<i64: 1, 256>}, {pipeline_mode = #tpu.pipeline_mode<synchronous>, transform_indices = @transform_13, window_bounds = array<i64: 1, 256>}, {pipeline_mode = #tpu.pipeline_mode<synchronous>, transform_indices = @transform_14, window_bounds = array<i64: 1, 128>}, {transform_indices = @transform_15, window_bounds = array<i64: 8, 128>}]} {
    %c0 = arith.constant 0 : index
    %c0_0 = arith.constant 0 : index
    %0 = vector.load %arg1[%c0, %c0_0] : memref<8x24xf32, #tpu.memory_space<vmem>>, vector<8x24xf32>
    %1 = arith.truncf %0 : vector<8x24xf32> to vector<8x24xbf16>
    %c0_1 = arith.constant 0 : index
    %c0_2 = arith.constant 0 : index
    %2 = vector.load %arg2[%c0_1, %c0_2] : memref<8x8xf32, #tpu.memory_space<vmem>>, vector<8x8xf32>
    %3 = arith.truncf %2 : vector<8x8xf32> to vector<8x8xbf16>
    %c0_3 = arith.constant 0 : index
    %c0_4 = arith.constant 0 : index
    %4 = vector.load %arg3[%c0_3, %c0_4] : memref<24x768xbf16, #tpu.memory_space<vmem>>, vector<24x768xbf16>
    %cst = arith.constant dense<0.000000e+00> : vector<8x768xf32>
    %5 = tpu.matmul %1, %4, %cst {dimension_numbers = #tpu.dot_dimension_numbers<[1], [0], [0], [1], [0, 0, 1, 1], [], []>} : vector<8x24xbf16>, vector<24x768xbf16>, vector<8x768xf32> -> vector<8x768xf32>
    %c0_5 = arith.constant 0 : index
    %c0_6 = arith.constant 0 : index
    %6 = vector.load %arg5[%c0_5, %c0_6] : memref<1x768xf32, #tpu.memory_space<vmem>>, vector<1x768xf32>
    %7 = vector.broadcast %6 : vector<1x768xf32> to vector<8x768xf32>
    %8 = arith.addf %5, %7 : vector<8x768xf32>
    %c0_7 = arith.constant 0 : index
    %c0_8 = arith.constant 0 : index
    %9 = vector.load %arg4[%c0_7, %c0_8] : memref<8x512xbf16, #tpu.memory_space<vmem>>, vector<8x512xbf16>
    %cst_9 = arith.constant dense<0.000000e+00> : vector<8x512xf32>
    %10 = tpu.matmul %3, %9, %cst_9 {dimension_numbers = #tpu.dot_dimension_numbers<[1], [0], [0], [1], [0, 0, 1, 1], [], []>} : vector<8x8xbf16>, vector<8x512xbf16>, vector<8x512xf32> -> vector<8x512xf32>
    %11 = vector.extract_strided_slice %8 {offsets = [0, 0], sizes = [8, 256], strides = [1, 1]} : vector<8x768xf32> to vector<8x256xf32>
    %12 = vector.extract_strided_slice %10 {offsets = [0, 0], sizes = [8, 256], strides = [1, 1]} : vector<8x512xf32> to vector<8x256xf32>
    %13 = arith.addf %11, %12 : vector<8x256xf32>
    %14 = vector.extract_strided_slice %8 {offsets = [0, 256], sizes = [8, 256], strides = [1, 1]} : vector<8x768xf32> to vector<8x256xf32>
    %15 = vector.extract_strided_slice %10 {offsets = [0, 256], sizes = [8, 256], strides = [1, 1]} : vector<8x512xf32> to vector<8x256xf32>
    %16 = arith.addf %14, %15 : vector<8x256xf32>
    %17 = vector.extract_strided_slice %8 {offsets = [0, 512], sizes = [8, 256], strides = [1, 1]} : vector<8x768xf32> to vector<8x256xf32>
    %cst_10 = arith.constant 0.000000e+00 : f32
    %18 = vector.broadcast %cst_10 : f32 to vector<8x256xf32>
    %19 = arith.maximumf %13, %18 : vector<8x256xf32>
    %20 = arith.truncf %19 : vector<8x256xf32> to vector<8x256xbf16>
    %c0_11 = arith.constant 0 : index
    %c0_12 = arith.constant 0 : index
    %21 = vector.load %arg6[%c0_11, %c0_12] : memref<256x256xbf16, #tpu.memory_space<vmem>>, vector<256x256xbf16>
    %cst_13 = arith.constant dense<0.000000e+00> : vector<8x256xf32>
    %22 = tpu.matmul %20, %21, %cst_13 {dimension_numbers = #tpu.dot_dimension_numbers<[1], [0], [0], [1], [0, 0, 1, 1], [], []>} : vector<8x256xbf16>, vector<256x256xbf16>, vector<8x256xf32> -> vector<8x256xf32>
    %c0_14 = arith.constant 0 : index
    %c0_15 = arith.constant 0 : index
    %23 = vector.load %arg7[%c0_14, %c0_15] : memref<1x256xf32, #tpu.memory_space<vmem>>, vector<1x256xf32>
    %24 = vector.broadcast %23 : vector<1x256xf32> to vector<8x256xf32>
    %25 = arith.addf %22, %24 : vector<8x256xf32>
    %cst_16 = arith.constant 0.000000e+00 : f32
    %26 = vector.broadcast %cst_16 : f32 to vector<8x256xf32>
    %27 = arith.maximumf %25, %26 : vector<8x256xf32>
    %cst_17 = arith.constant 0.000000e+00 : f32
    %28 = vector.broadcast %cst_17 : f32 to vector<8x256xf32>
    %29 = arith.maximumf %16, %28 : vector<8x256xf32>
    %30 = arith.truncf %29 : vector<8x256xf32> to vector<8x256xbf16>
    %c0_18 = arith.constant 0 : index
    %c0_19 = arith.constant 0 : index
    %31 = vector.load %arg8[%c0_18, %c0_19] : memref<256x256xbf16, #tpu.memory_space<vmem>>, vector<256x256xbf16>
    %cst_20 = arith.constant dense<0.000000e+00> : vector<8x256xf32>
    %32 = tpu.matmul %30, %31, %cst_20 {dimension_numbers = #tpu.dot_dimension_numbers<[1], [0], [0], [1], [0, 0, 1, 1], [], []>} : vector<8x256xbf16>, vector<256x256xbf16>, vector<8x256xf32> -> vector<8x256xf32>
    %c0_21 = arith.constant 0 : index
    %c0_22 = arith.constant 0 : index
    %33 = vector.load %arg9[%c0_21, %c0_22] : memref<1x256xf32, #tpu.memory_space<vmem>>, vector<1x256xf32>
    %34 = vector.broadcast %33 : vector<1x256xf32> to vector<8x256xf32>
    %35 = arith.addf %32, %34 : vector<8x256xf32>
    %cst_23 = arith.constant 0.000000e+00 : f32
    %36 = vector.broadcast %cst_23 : f32 to vector<8x256xf32>
    %37 = arith.maximumf %35, %36 : vector<8x256xf32>
    %cst_24 = arith.constant 0.000000e+00 : f32
    %38 = vector.broadcast %cst_24 : f32 to vector<8x256xf32>
    %39 = arith.maximumf %17, %38 : vector<8x256xf32>
    %40 = arith.truncf %39 : vector<8x256xf32> to vector<8x256xbf16>
    %c0_25 = arith.constant 0 : index
    %c0_26 = arith.constant 0 : index
    %41 = vector.load %arg10[%c0_25, %c0_26] : memref<256x256xbf16, #tpu.memory_space<vmem>>, vector<256x256xbf16>
    %cst_27 = arith.constant dense<0.000000e+00> : vector<8x256xf32>
    %42 = tpu.matmul %40, %41, %cst_27 {dimension_numbers = #tpu.dot_dimension_numbers<[1], [0], [0], [1], [0, 0, 1, 1], [], []>} : vector<8x256xbf16>, vector<256x256xbf16>, vector<8x256xf32> -> vector<8x256xf32>
    %c0_28 = arith.constant 0 : index
    %c0_29 = arith.constant 0 : index
    %43 = vector.load %arg11[%c0_28, %c0_29] : memref<1x256xf32, #tpu.memory_space<vmem>>, vector<1x256xf32>
    %44 = vector.broadcast %43 : vector<1x256xf32> to vector<8x256xf32>
    %45 = arith.addf %42, %44 : vector<8x256xf32>
    %cst_30 = arith.constant 0.000000e+00 : f32
    %46 = vector.broadcast %cst_30 : f32 to vector<8x256xf32>
    %47 = arith.maximumf %45, %46 : vector<8x256xf32>
    %c0_31 = arith.constant 0 : index
    %c0_32 = arith.constant 0 : index
    %48 = vector.load %arg12[%c0_31, %c0_32] : memref<1x256xf32, #tpu.memory_space<vmem>>, vector<1x256xf32>
    %49 = vector.broadcast %48 : vector<1x256xf32> to vector<8x256xf32>
    %50 = arith.mulf %27, %49 : vector<8x256xf32>
    %cst_33 = arith.constant dense<0.000000e+00> : vector<8xf32>
    %51 = vector.multi_reduction <add>, %50, %cst_33 [1] : vector<8x256xf32> to vector<8xf32>
    %52 = vector.shape_cast %51 : vector<8xf32> to vector<8x1xf32>
    %c0_34 = arith.constant 0 : index
    %c0_35 = arith.constant 0 : index
    %53 = vector.load %arg13[%c0_34, %c0_35] : memref<1x256xf32, #tpu.memory_space<vmem>>, vector<1x256xf32>
    %54 = vector.broadcast %53 : vector<1x256xf32> to vector<8x256xf32>
    %55 = arith.mulf %37, %54 : vector<8x256xf32>
    %cst_36 = arith.constant dense<0.000000e+00> : vector<8xf32>
    %56 = vector.multi_reduction <add>, %55, %cst_36 [1] : vector<8x256xf32> to vector<8xf32>
    %57 = vector.shape_cast %56 : vector<8xf32> to vector<8x1xf32>
    %c0_37 = arith.constant 0 : index
    %c0_38 = arith.constant 0 : index
    %58 = vector.load %arg14[%c0_37, %c0_38] : memref<1x256xf32, #tpu.memory_space<vmem>>, vector<1x256xf32>
    %59 = vector.broadcast %58 : vector<1x256xf32> to vector<8x256xf32>
    %60 = arith.mulf %47, %59 : vector<8x256xf32>
    %cst_39 = arith.constant dense<0.000000e+00> : vector<8xf32>
    %61 = vector.multi_reduction <add>, %60, %cst_39 [1] : vector<8x256xf32> to vector<8xf32>
    %62 = vector.shape_cast %61 : vector<8xf32> to vector<8x1xf32>
    %63 = tpu.iota {dimensions = array<i32: 1>} : vector<8x128xi32>
    %c0_i32 = arith.constant 0 : i32
    %64 = vector.broadcast %c0_i32 : i32 to vector<8x128xi32>
    %65 = arith.cmpi eq, %63, %64 : vector<8x128xi32>
    %c1_i32 = arith.constant 1 : i32
    %66 = vector.broadcast %c1_i32 : i32 to vector<8x128xi32>
    %67 = arith.cmpi eq, %63, %66 : vector<8x128xi32>
    %c2_i32 = arith.constant 2 : i32
    %68 = vector.broadcast %c2_i32 : i32 to vector<8x128xi32>
    %69 = arith.cmpi eq, %63, %68 : vector<8x128xi32>
    %cst_40 = arith.constant 0.000000e+00 : f32
    %70 = vector.shape_cast %62 : vector<8x1xf32> to vector<8x1xf32>
    %71 = vector.broadcast %70 : vector<8x1xf32> to vector<8x128xf32>
    %72 = vector.broadcast %cst_40 : f32 to vector<8x128xf32>
    %73 = arith.select %69, %71, %72 : vector<8x128xi1>, vector<8x128xf32>
    %74 = vector.shape_cast %57 : vector<8x1xf32> to vector<8x1xf32>
    %75 = vector.broadcast %74 : vector<8x1xf32> to vector<8x128xf32>
    %76 = arith.select %67, %75, %73 : vector<8x128xi1>, vector<8x128xf32>
    %77 = vector.shape_cast %52 : vector<8x1xf32> to vector<8x1xf32>
    %78 = vector.broadcast %77 : vector<8x1xf32> to vector<8x128xf32>
    %79 = arith.select %65, %78, %76 : vector<8x128xi1>, vector<8x128xf32>
    %c0_41 = arith.constant 0 : index
    %c0_42 = arith.constant 0 : index
    %80 = vector.load %arg15[%c0_41, %c0_42] : memref<1x128xf32, #tpu.memory_space<vmem>>, vector<1x128xf32>
    %81 = vector.broadcast %80 : vector<1x128xf32> to vector<8x128xf32>
    %82 = arith.addf %79, %81 : vector<8x128xf32>
    %c0_43 = arith.constant 0 : index
    %c0_44 = arith.constant 0 : index
    %83 = vector.load %arg16[%c0_43, %c0_44] : memref<8x128xf32, #tpu.memory_space<vmem>>, vector<8x128xf32>
    tpu.vector_store %arg16[%c0_43, %c0_44], %82 {strides = array<i32>} : memref<8x128xf32, #tpu.memory_space<vmem>>, vector<8x128xf32>,
    return
  }
  func.func @transform_0(%arg0: i32) -> (i32, i32) {
    %c0_i32 = arith.constant 0 : i32
    %c0_i32_0 = arith.constant 0 : i32
    return %arg0, %c0_i32 : i32, i32
  }
  func.func @transform_1(%arg0: i32) -> (i32, i32) {
    %c0_i32 = arith.constant 0 : i32
    %c0_i32_0 = arith.constant 0 : i32
    return %arg0, %c0_i32 : i32, i32
  }
  func.func @transform_2(%arg0: i32) -> (i32, i32) {
    %c0_i32 = arith.constant 0 : i32
    %c0_i32_0 = arith.constant 0 : i32
    %c0_i32_1 = arith.constant 0 : i32
    return %c0_i32, %c0_i32_0 : i32, i32
  }
  func.func @transform_3(%arg0: i32) -> (i32, i32) {
    %c0_i32 = arith.constant 0 : i32
    %c0_i32_0 = arith.constant 0 : i32
    %c0_i32_1 = arith.constant 0 : i32
    return %c0_i32, %c0_i32_0 : i32, i32
  }
  func.func @transform_4(%arg0: i32) -> (i32, i32) {
    %c0_i32 = arith.constant 0 : i32
    %c0_i32_0 = arith.constant 0 : i32
    %c0_i32_1 = arith.constant 0 : i32
    return %c0_i32, %c0_i32_0 : i32, i32
  }
  func.func @transform_5(%arg0: i32) -> (i32, i32) {
    %c0_i32 = arith.constant 0 : i32
    %c0_i32_0 = arith.constant 0 : i32
    %c0_i32_1 = arith.constant 0 : i32
    return %c0_i32, %c0_i32_0 : i32, i32
  }
  func.func @transform_6(%arg0: i32) -> (i32, i32) {
    %c0_i32 = arith.constant 0 : i32
    %c0_i32_0 = arith.constant 0 : i32
    %c0_i32_1 = arith.constant 0 : i32
    return %c0_i32, %c0_i32_0 : i32, i32
  }
  func.func @transform_7(%arg0: i32) -> (i32, i32) {
    %c0_i32 = arith.constant 0 : i32
    %c0_i32_0 = arith.constant 0 : i32
    %c0_i32_1 = arith.constant 0 : i32
    return %c0_i32, %c0_i32_0 : i32, i32
  }
  func.func @transform_8(%arg0: i32) -> (i32, i32) {
    %c0_i32 = arith.constant 0 : i32
    %c0_i32_0 = arith.constant 0 : i32
    %c0_i32_1 = arith.constant 0 : i32
    return %c0_i32, %c0_i32_0 : i32, i32
  }
  func.func @transform_9(%arg0: i32) -> (i32, i32) {
    %c0_i32 = arith.constant 0 : i32
    %c0_i32_0 = arith.constant 0 : i32
    %c0_i32_1 = arith.constant 0 : i32
    return %c0_i32, %c0_i32_0 : i32, i32
  }
  func.func @transform_10(%arg0: i32) -> (i32, i32) {
    %c0_i32 = arith.constant 0 : i32
    %c0_i32_0 = arith.constant 0 : i32
    %c0_i32_1 = arith.constant 0 : i32
    return %c0_i32, %c0_i32_0 : i32, i32
  }
  func.func @transform_11(%arg0: i32) -> (i32, i32) {
    %c0_i32 = arith.constant 0 : i32
    %c0_i32_0 = arith.constant 0 : i32
    %c0_i32_1 = arith.constant 0 : i32
    return %c0_i32, %c0_i32_0 : i32, i32
  }
  func.func @transform_12(%arg0: i32) -> (i32, i32) {
    %c0_i32 = arith.constant 0 : i32
    %c0_i32_0 = arith.constant 0 : i32
    %c0_i32_1 = arith.constant 0 : i32
    return %c0_i32, %c0_i32_0 : i32, i32
  }
  func.func @transform_13(%arg0: i32) -> (i32, i32) {
    %c0_i32 = arith.constant 0 : i32
    %c0_i32_0 = arith.constant 0 : i32
    %c0_i32_1 = arith.constant 0 : i32
    return %c0_i32, %c0_i32_0 : i32, i32
  }
  func.func @transform_14(%arg0: i32) -> (i32, i32) {
    %c0_i32 = arith.constant 0 : i32
    %c0_i32_0 = arith.constant 0 : i32
    %c0_i32_1 = arith.constant 0 : i32
    return %c0_i32, %c0_i32_0 : i32, i32
  }
  func.func @transform_15(%arg0: i32) -> (i32, i32) {
    %c0_i32 = arith.constant 0 : i32
    %c0_i32_0 = arith.constant 0 : i32
    return %arg0, %c0_i32 : i32, i32
  }
}

</mosaic_0001>

<llo_original>
// kernel: critic_forward.1
$region0: #{critic_forward.1}
  #allocation0 [shape = 'u32[]', space=smem, size = 0x4, offset = 0x4, fixed_abs, tag = 'smem constant byte address 0x4 - core index']
  #allocation1 [shape = 'u32[144,128]{1,0:T(1,128)}', space=vmem, size = 0x12000, scoped, tag = 'internal scratch']
  %s0 = inlined_call_operand.vmem [shape: f32[8,24], index: 0, kind: input, shape index: {}]
  %s1 = inlined_call_operand.vmem [shape: f32[8,8], index: 1, kind: input, shape index: {}]
  %s2 = inlined_call_operand.vmem [shape: bf16[24,768], index: 2, kind: input, shape index: {}]
  %s3 = inlined_call_operand.vmem [shape: bf16[8,512], index: 3, kind: input, shape index: {}]
  %s4 = inlined_call_operand.vmem [shape: f32[1,768], index: 4, kind: input, shape index: {}]
  %s5 = inlined_call_operand.vmem [shape: bf16[256,256], index: 5, kind: input, shape index: {}]
  %s6 = inlined_call_operand.vmem [shape: f32[1,256], index: 6, kind: input, shape index: {}]
  %s7 = inlined_call_operand.vmem [shape: bf16[256,256], index: 7, kind: input, shape index: {}]
  %s8 = inlined_call_operand.vmem [shape: f32[1,256], index: 8, kind: input, shape index: {}]
  %s9 = inlined_call_operand.vmem [shape: bf16[256,256], index: 9, kind: input, shape index: {}]
  %s10 = inlined_call_operand.vmem [shape: f32[1,256], index: 10, kind: input, shape index: {}]
  %s11 = inlined_call_operand.vmem [shape: f32[1,256], index: 11, kind: input, shape index: {}]
  %s12 = inlined_call_operand.vmem [shape: f32[1,256], index: 12, kind: input, shape index: {}]
  %s13 = inlined_call_operand.vmem [shape: f32[1,256], index: 13, kind: input, shape index: {}]
  %s14 = inlined_call_operand.vmem [shape: f32[1,128], index: 14, kind: input, shape index: {}]
  %s15 = inlined_call_operand.vmem [shape: f32[8,128], index: 15, kind: output, shape index: {}]
  %s16 = sld [smem:[#allocation0]]
  $region70: #{critic_forward.1} parent=0
    _
  %s18 = ssub.s32 1, %s16
  %s19 = scalar_select 0, %s18, %s16
  // Predicated region
  $region2: #{critic_forward.1} parent=0 // pred_check
    _
  $region3: #{critic_forward.1} parent=0 // pred_check_branch
    %21 = sbr.rel (0) target = $region5
  $region4: #{critic_forward.1} parent=0 // pred_region
    _
  $region5: #{critic_forward.1} parent=0 // pred_fallthru
    _
  // Predicated region
  $region6: #{critic_forward.1} parent=0 // pred_check
    _
  $region7: #{critic_forward.1} parent=0 // pred_check_branch
    %23 = sbr.rel (0) target = $region9
  $region8: #{critic_forward.1} parent=0 // pred_region
    _
  $region9: #{critic_forward.1} parent=0 // pred_fallthru
    _
  // Predicated region
  $region10: #{critic_forward.1} parent=0 // pred_check
    _
  $region11: #{critic_forward.1} parent=0 // pred_check_branch
    %25 = sbr.rel (0) target = $region13
  $region12: #{critic_forward.1} parent=0 // pred_region
    _
  $region13: #{critic_forward.1} parent=0 // pred_fallthru
    _
  // Predicated region
  $region14: #{critic_forward.1} parent=0 // pred_check
    _
  $region15: #{critic_forward.1} parent=0 // pred_check_branch
    %27 = sbr.rel (0) target = $region17
  $region16: #{critic_forward.1} parent=0 // pred_region
    _
  $region17: #{critic_forward.1} parent=0 // pred_fallthru
    _
  // Predicated region
  $region18: #{critic_forward.1} parent=0 // pred_check
    _
  $region19: #{critic_forward.1} parent=0 // pred_check_branch
    %29 = sbr.rel (0) target = $region21
  $region20: #{critic_forward.1} parent=0 // pred_region
    _
  $region21: #{critic_forward.1} parent=0 // pred_fallthru
    _
  // Predicated region
  $region22: #{critic_forward.1} parent=0 // pred_check
    _
  $region23: #{critic_forward.1} parent=0 // pred_check_branch
    %31 = sbr.rel (0) target = $region25
  $region24: #{critic_forward.1} parent=0 // pred_region
    _
  $region25: #{critic_forward.1} parent=0 // pred_fallthru
    _
  // Predicated region
  $region26: #{critic_forward.1} parent=0 // pred_check
    _
  $region27: #{critic_forward.1} parent=0 // pred_check_branch
    %33 = sbr.rel (0) target = $region29
  $region28: #{critic_forward.1} parent=0 // pred_region
    _
  $region29: #{critic_forward.1} parent=0 // pred_fallthru
    _
  // Predicated region
  $region30: #{critic_forward.1} parent=0 // pred_check
    _
  $region31: #{critic_forward.1} parent=0 // pred_check_branch
    %35 = sbr.rel (0) target = $region33
  $region32: #{critic_forward.1} parent=0 // pred_region
    _
  $region33: #{critic_forward.1} parent=0 // pred_fallthru
    _
  // Predicated region
  $region34: #{critic_forward.1} parent=0 // pred_check
    _
  $region35: #{critic_forward.1} parent=0 // pred_check_branch
    %37 = sbr.rel (0) target = $region37
  $region36: #{critic_forward.1} parent=0 // pred_region
    _
  $region37: #{critic_forward.1} parent=0 // pred_fallthru
    _
  // Predicated region
  $region38: #{critic_forward.1} parent=0 // pred_check
    _
  $region39: #{critic_forward.1} parent=0 // pred_check_branch
    %39 = sbr.rel (0) target = $region41
  $region40: #{critic_forward.1} parent=0 // pred_region
    _
  $region41: #{critic_forward.1} parent=0 // pred_fallthru
    _
  // Predicated region
  $region42: #{critic_forward.1} parent=0 // pred_check
    _
  $region43: #{critic_forward.1} parent=0 // pred_check_branch
    %41 = sbr.rel (0) target = $region45
  $region44: #{critic_forward.1} parent=0 // pred_region
    _
  $region45: #{critic_forward.1} parent=0 // pred_fallthru
    _
  // Predicated region
  $region46: #{critic_forward.1} parent=0 // pred_check
    _
  $region47: #{critic_forward.1} parent=0 // pred_check_branch
    %43 = sbr.rel (0) target = $region49
  $region48: #{critic_forward.1} parent=0 // pred_region
    _
  $region49: #{critic_forward.1} parent=0 // pred_fallthru
    _
  // Predicated region
  $region50: #{critic_forward.1} parent=0 // pred_check
    _
  $region51: #{critic_forward.1} parent=0 // pred_check_branch
    %45 = sbr.rel (0) target = $region53
  $region52: #{critic_forward.1} parent=0 // pred_region
    _
  $region53: #{critic_forward.1} parent=0 // pred_fallthru
    _
  // Predicated region
  $region54: #{critic_forward.1} parent=0 // pred_check
    _
  $region55: #{critic_forward.1} parent=0 // pred_check_branch
    %47 = sbr.rel (0) target = $region57
  $region56: #{critic_forward.1} parent=0 // pred_region
    _
  $region57: #{critic_forward.1} parent=0 // pred_fallthru
    _
  // Predicated region
  $region58: #{critic_forward.1} parent=0 // pred_check
    _
  $region59: #{critic_forward.1} parent=0 // pred_check_branch
    %49 = sbr.rel (0) target = $region61
  $region60: #{critic_forward.1} parent=0 // pred_region
    _
  $region61: #{critic_forward.1} parent=0 // pred_fallthru
    _
  %v51 = vld [vmem:[%s0] sm:$0xff]
  %v52 = vpack.c.bf16 %v51, %v51
  %v53 = vld [vmem:[%s1] sm:$0xff]
  %v54 = vpack.c.bf16 %v53, %v53
  %v55 = vld [vmem:[%s2] sm:$0xff]
  %v56 = vld [vmem:[%s2 + $0x8] sm:$0xff]
  %v57 = vld [vmem:[%s2 + $0x10] sm:$0xff]
  %v58 = vld [vmem:[%s2 + $0x18] sm:$0xff]
  %v59 = vld [vmem:[%s2 + $0x20] sm:$0xff]
  %v60 = vld [vmem:[%s2 + $0x28] sm:$0xff]
  %v61 = vld [vmem:[%s2 + $0x30] sm:$0xff]
  %v62 = vld [vmem:[%s2 + $0x38] sm:$0xff]
  %v63 = vld [vmem:[%s2 + $0x40] sm:$0xff]
  %v64 = vld [vmem:[%s4] sm:$0x3f]
  %v66 = vlaneseq
  %v67 = vshrl.u32 %v66, 7
  %v68 = vsub.s32 0, %v67
  %v69 = vrot.slane %v64, %v68
  %v70 = vlaneseq
  %v71 = vshrl.u32 %v70, 7
  %v72 = vsub.s32 1, %v71
  %v73 = vrot.slane %v64, %v72
  %v74 = vlaneseq
  %v75 = vshrl.u32 %v74, 7
  %v76 = vsub.s32 2, %v75
  %v77 = vrot.slane %v64, %v76
  %v78 = vlaneseq
  %v79 = vshrl.u32 %v78, 7
  %v80 = vsub.s32 3, %v79
  %v81 = vrot.slane %v64, %v80
  %v82 = vlaneseq
  %v83 = vshrl.u32 %v82, 7
  %v84 = vsub.s32 4, %v83
  %v85 = vrot.slane %v64, %v84
  %v86 = vlaneseq
  %v87 = vshrl.u32 %v86, 7
  %v88 = vsub.s32 5, %v87
  %v89 = vrot.slane %v64, %v88
  %v105 = vunpack.c.l.b16 %v55
  %v106 = vunpack.c.h.b16 %v55
  %v107 = vunpack.c.l.b16 %v56
  %v108 = vunpack.c.h.b16 %v56
  %v109 = vunpack.c.l.b16 %v57
  %v110 = vunpack.c.h.b16 %v57
  %v111 = vunpack.c.l.b16 %v58
  %v112 = vunpack.c.h.b16 %v58
  %v113 = vunpack.c.l.b16 %v59
  %v114 = vunpack.c.h.b16 %v59
  %v115 = vunpack.c.l.b16 %v60
  %v116 = vunpack.c.h.b16 %v60
  %v117 = vunpack.c.l.b16 %v61
  %v118 = vunpack.c.h.b16 %v61
  %v119 = vunpack.c.l.b16 %v62
  %v120 = vunpack.c.h.b16 %v62
  %v121 = vunpack.c.l.b16 %v63
  %v122 = vunpack.c.h.b16 %v63
  %v123 = vpack.c.b16 %v111, %v105
  %v124 = vpack.c.b16 %v112, %v106
  %v125 = vpack.c.b16 %v113, %v107
  %v126 = vpack.c.b16 %v114, %v108
  %v127 = vpack.c.b16 %v115, %v109
  %v128 = vpack.c.b16 %v116, %v110
  %v129 = vpack.c.b16 %v117, %v117
  %v130 = vpack.c.b16 %v118, %v118
  %v131 = vpack.c.b16 %v119, %v119
  %v132 = vpack.c.b16 %v120, %v120
  %v133 = vpack.c.b16 %v121, %v121
  %v134 = vpack.c.b16 %v122, %v122
  %vm141 = vcmask 195584
  %v143 = vsel %vm141, %v52, 0
  %vm145 = vcmask 1043456
  %v147 = vsel %vm145, %v129, 0
  %v150 = vsel %vm145, %v130, 0
  %v153 = vsel %vm145, %v131, 0
  %v156 = vsel %vm145, %v132, 0
  %v159 = vsel %vm145, %v133, 0
  %v162 = vsel %vm145, %v134, 0
  %164 = vmatprep.subr.bf16.mxu0 %v124
  %165 = vmatpush1.bf16.msra.mxu0 %v123
  %166 = vmatprep.subr.bf16.mxu0 %v150
  %167 = vmatpush1.bf16.msra.mxu0 %v147
  %168 = vmatprep.subr.bf16.mxu0 0
  %169 = vmatpush1.bf16.msra.mxu0 0
  %170 = vmatprep.subr.bf16.mxu0 0
  %171 = vmatpush1.bf16.msra.mxu0 0
  %172 = vmatprep.subr.bf16.mxu0 0
  %173 = vmatpush1.bf16.msra.mxu0 0
  %174 = vmatprep.subr.bf16.mxu0 0
  %175 = vmatpush1.bf16.msra.mxu0 0
  %176 = vmatprep.subr.bf16.mxu0 0
  %177 = vmatpush1.bf16.msra.mxu0 0
  %178 = vmatprep.subr.bf16.mxu0 0
  %179 = vmatpush1.bf16.msra.mxu0 0
  %180 = vmatprep.subr.bf16.mxu0 0
  %181 = vmatpush1.bf16.msra.mxu0 0
  %182 = vmatprep.subr.bf16.mxu0 0
  %183 = vmatpush1.bf16.msra.mxu0 0
  %184 = vmatprep.subr.bf16.mxu0 0
  %185 = vmatpush1.bf16.msra.mxu0 0
  %186 = vmatprep.subr.bf16.mxu0 0
  %187 = vmatpush1.bf16.msra.mxu0 0
  %188 = vmatprep.subr.bf16.mxu0 0
  %189 = vmatpush1.bf16.msra.mxu0 0
  %190 = vmatprep.subr.bf16.mxu0 0
  %191 = vmatpush1.bf16.msra.mxu0 0
  %192 = vmatprep.subr.bf16.mxu0 0
  %193 = vmatpush1.bf16.msra.mxu0 0
  %194 = vmatprep.subr.bf16.mxu0 0
  %195 = vmatpush1.bf16.msra.mxu0 0
  %196 = vmatprep.mubr.bf16.mxu0 0
  %197 = vmatmul.mubr.bf16.gmra.mrb[0].mxu0 %v143
  %v198 = vpop.f32.mrb[0].mxu0
  %v199 = vadd.f32 %v69, %v198
  %v200 = vpop.f32.mrb[0].mxu0
  %v201 = vadd.f32 %v73, %v200
  %v202 = vpop.f32.mrb[0].mxu0
  %v203 = vpop.f32.mrb[0].mxu0
  %204 = vdwg.mxu0
  %205 = vmatprep.subr.bf16.mxu0 %v126
  %206 = vmatpush1.bf16.msra.mxu0 %v125
  %207 = vmatprep.subr.bf16.mxu0 %v156
  %208 = vmatpush1.bf16.msra.mxu0 %v153
  %209 = vmatprep.subr.bf16.mxu0 0
  %210 = vmatpush1.bf16.msra.mxu0 0
  %211 = vmatprep.subr.bf16.mxu0 0
  %212 = vmatpush1.bf16.msra.mxu0 0
  %213 = vmatprep.subr.bf16.mxu0 0
  %214 = vmatpush1.bf16.msra.mxu0 0
  %215 = vmatprep.subr.bf16.mxu0 0
  %216 = vmatpush1.bf16.msra.mxu0 0
  %217 = vmatprep.subr.bf16.mxu0 0
  %218 = vmatpush1.bf16.msra.mxu0 0
  %219 = vmatprep.subr.bf16.mxu0 0
  %220 = vmatpush1.bf16.msra.mxu0 0
  %221 = vmatprep.subr.bf16.mxu0 0
  %222 = vmatpush1.bf16.msra.mxu0 0
  %223 = vmatprep.subr.bf16.mxu0 0
  %224 = vmatpush1.bf16.msra.mxu0 0
  %225 = vmatprep.subr.bf16.mxu0 0
  %226 = vmatpush1.bf16.msra.mxu0 0
  %227 = vmatprep.subr.bf16.mxu0 0
  %228 = vmatpush1.bf16.msra.mxu0 0
  %229 = vmatprep.subr.bf16.mxu0 0
  %230 = vmatpush1.bf16.msra.mxu0 0
  %231 = vmatprep.subr.bf16.mxu0 0
  %232 = vmatpush1.bf16.msra.mxu0 0
  %233 = vmatprep.subr.bf16.mxu0 0
  %234 = vmatpush1.bf16.msra.mxu0 0
  %235 = vmatprep.subr.bf16.mxu0 0
  %236 = vmatpush1.bf16.msra.mxu0 0
  %237 = vmatprep.mubr.bf16.mxu0 0
  %238 = vmatmul.mubr.bf16.gmra.mrb[0].mxu0 %v143
  %v239 = vpop.f32.mrb[0].mxu0
  %v240 = vadd.f32 %v77, %v239
  %v241 = vpop.f32.mrb[0].mxu0
  %v242 = vadd.f32 %v81, %v241
  %v243 = vpop.f32.mrb[0].mxu0
  %v244 = vpop.f32.mrb[0].mxu0
  %245 = vdwg.mxu0
  %246 = vmatprep.subr.bf16.mxu0 %v128
  %247 = vmatpush1.bf16.msra.mxu0 %v127
  %248 = vmatprep.subr.bf16.mxu0 %v162
  %249 = vmatpush1.bf16.msra.mxu0 %v159
  %250 = vmatprep.subr.bf16.mxu0 0
  %251 = vmatpush1.bf16.msra.mxu0 0
  %252 = vmatprep.subr.bf16.mxu0 0
  %253 = vmatpush1.bf16.msra.mxu0 0
  %254 = vmatprep.subr.bf16.mxu0 0
  %255 = vmatpush1.bf16.msra.mxu0 0
  %256 = vmatprep.subr.bf16.mxu0 0
  %257 = vmatpush1.bf16.msra.mxu0 0
  %258 = vmatprep.subr.bf16.mxu0 0
  %259 = vmatpush1.bf16.msra.mxu0 0
  %260 = vmatprep.subr.bf16.mxu0 0
  %261 = vmatpush1.bf16.msra.mxu0 0
  %262 = vmatprep.subr.bf16.mxu0 0
  %263 = vmatpush1.bf16.msra.mxu0 0
  %264 = vmatprep.subr.bf16.mxu0 0
  %265 = vmatpush1.bf16.msra.mxu0 0
  %266 = vmatprep.subr.bf16.mxu0 0
  %267 = vmatpush1.bf16.msra.mxu0 0
  %268 = vmatprep.subr.bf16.mxu0 0
  %269 = vmatpush1.bf16.msra.mxu0 0
  %270 = vmatprep.subr.bf16.mxu0 0
  %271 = vmatpush1.bf16.msra.mxu0 0
  %272 = vmatprep.subr.bf16.mxu0 0
  %273 = vmatpush1.bf16.msra.mxu0 0
  %274 = vmatprep.subr.bf16.mxu0 0
  %275 = vmatpush1.bf16.msra.mxu0 0
  %276 = vmatprep.subr.bf16.mxu0 0
  %277 = vmatpush1.bf16.msra.mxu0 0
  %278 = vmatprep.mubr.bf16.mxu0 0
  %279 = vmatmul.mubr.bf16.gmra.mrb[0].mxu0 %v143
  %v280 = vpop.f32.mrb[0].mxu0
  %v281 = vadd.f32 %v85, %v280
  %v282 = vpop.f32.mrb[0].mxu0
  %v283 = vadd.f32 %v89, %v282
  %v284 = vpop.f32.mrb[0].mxu0
  %v285 = vpop.f32.mrb[0].mxu0
  %286 = vdwg.mxu0
  %v287 = vld [vmem:[%s3] sm:$0xff]
  %v288 = vld [vmem:[%s3 + $0x8] sm:$0xff]
  %v291 = vunpack.c.l.b16 %v287
  %v292 = vunpack.c.h.b16 %v287
  %v293 = vunpack.c.l.b16 %v288
  %v294 = vunpack.c.h.b16 %v288
  %v295 = vpack.c.b16 %v291, %v291
  %v296 = vpack.c.b16 %v292, %v292
  %v297 = vpack.c.b16 %v293, %v293
  %v298 = vpack.c.b16 %v294, %v294
  %vm299 = vcmask 64512
  %v301 = vsel %vm299, %v54, 0
  %v304 = vsel %vm145, %v295, 0
  %v307 = vsel %vm145, %v296, 0
  %v310 = vsel %vm145, %v297, 0
  %v313 = vsel %vm145, %v298, 0
  %315 = vmatprep.subr.bf16.mxu0 %v307
  %316 = vmatpush1.bf16.msra.mxu0 %v304
  %317 = vmatprep.subr.bf16.mxu0 0
  %318 = vmatpush1.bf16.msra.mxu0 0
  %319 = vmatprep.subr.bf16.mxu0 0
  %320 = vmatpush1.bf16.msra.mxu0 0
  %321 = vmatprep.subr.bf16.mxu0 0
  %322 = vmatpush1.bf16.msra.mxu0 0
  %323 = vmatprep.subr.bf16.mxu0 0
  %324 = vmatpush1.bf16.msra.mxu0 0
  %325 = vmatprep.subr.bf16.mxu0 0
  %326 = vmatpush1.bf16.msra.mxu0 0
  %327 = vmatprep.subr.bf16.mxu0 0
  %328 = vmatpush1.bf16.msra.mxu0 0
  %329 = vmatprep.subr.bf16.mxu0 0
  %330 = vmatpush1.bf16.msra.mxu0 0
  %331 = vmatprep.subr.bf16.mxu0 0
  %332 = vmatpush1.bf16.msra.mxu0 0
  %333 = vmatprep.subr.bf16.mxu0 0
  %334 = vmatpush1.bf16.msra.mxu0 0
  %335 = vmatprep.subr.bf16.mxu0 0
  %336 = vmatpush1.bf16.msra.mxu0 0
  %337 = vmatprep.subr.bf16.mxu0 0
  %338 = vmatpush1.bf16.msra.mxu0 0
  %339 = vmatprep.subr.bf16.mxu0 0
  %340 = vmatpush1.bf16.msra.mxu0 0
  %341 = vmatprep.subr.bf16.mxu0 0
  %342 = vmatpush1.bf16.msra.mxu0 0
  %343 = vmatprep.subr.bf16.mxu0 0
  %344 = vmatpush1.bf16.msra.mxu0 0
  %345 = vmatprep.subr.bf16.mxu0 0
  %346 = vmatpush1.bf16.msra.mxu0 0
  %347 = vmatprep.mubr.bf16.mxu0 0
  %348 = vmatmul.mubr.bf16.gmra.mrb[0].mxu0 %v301
  %v349 = vpop.f32.mrb[0].mxu0
  %v350 = vadd.f32 0.0, %v349
  %v351 = vpop.f32.mrb[0].mxu0
  %v352 = vadd.f32 0.0, %v351
  %v353 = vpop.f32.mrb[0].mxu0
  %v354 = vpop.f32.mrb[0].mxu0
  %355 = vdwg.mxu0
  %356 = vmatprep.subr.bf16.mxu0 %v313
  %357 = vmatpush1.bf16.msra.mxu0 %v310
  %358 = vmatprep.subr.bf16.mxu0 0
  %359 = vmatpush1.bf16.msra.mxu0 0
  %360 = vmatprep.subr.bf16.mxu0 0
  %361 = vmatpush1.bf16.msra.mxu0 0
  %362 = vmatprep.subr.bf16.mxu0 0
  %363 = vmatpush1.bf16.msra.mxu0 0
  %364 = vmatprep.subr.bf16.mxu0 0
  %365 = vmatpush1.bf16.msra.mxu0 0
  %366 = vmatprep.subr.bf16.mxu0 0
  %367 = vmatpush1.bf16.msra.mxu0 0
  %368 = vmatprep.subr.bf16.mxu0 0
  %369 = vmatpush1.bf16.msra.mxu0 0
  %370 = vmatprep.subr.bf16.mxu0 0
  %371 = vmatpush1.bf16.msra.mxu0 0
  %372 = vmatprep.subr.bf16.mxu0 0
  %373 = vmatpush1.bf16.msra.mxu0 0
  %374 = vmatprep.subr.bf16.mxu0 0
  %375 = vmatpush1.bf16.msra.mxu0 0
  %376 = vmatprep.subr.bf16.mxu0 0
  %377 = vmatpush1.bf16.msra.mxu0 0
  %378 = vmatprep.subr.bf16.mxu0 0
  %379 = vmatpush1.bf16.msra.mxu0 0
  %380 = vmatprep.subr.bf16.mxu0 0
  %381 = vmatpush1.bf16.msra.mxu0 0
  %382 = vmatprep.subr.bf16.mxu0 0
  %383 = vmatpush1.bf16.msra.mxu0 0
  %384 = vmatprep.subr.bf16.mxu0 0
  %385 = vmatpush1.bf16.msra.mxu0 0
  %386 = vmatprep.subr.bf16.mxu0 0
  %387 = vmatpush1.bf16.msra.mxu0 0
  %388 = vmatprep.mubr.bf16.mxu0 0
  %389 = vmatmul.mubr.bf16.gmra.mrb[0].mxu0 %v301
  %v390 = vpop.f32.mrb[0].mxu0
  %v391 = vadd.f32 0.0, %v390
  %v392 = vpop.f32.mrb[0].mxu0
  %v393 = vadd.f32 0.0, %v392
  %v394 = vpop.f32.mrb[0].mxu0
  %v395 = vpop.f32.mrb[0].mxu0
  %396 = vdwg.mxu0
  %v397 = vadd.f32 %v199, %v350
  %v398 = vadd.f32 %v201, %v352
  %v399 = vadd.f32 %v240, %v391
  %v400 = vadd.f32 %v242, %v393
  %v401 = vmax.f32 %v397, 0.0
  %v402 = vmax.f32 %v398, 0.0
  %v403 = vpack.c.bf16 %v401, %v401
  %v404 = vpack.c.bf16 %v402, %v402
  %v405 = vld [vmem:[%s5] sm:$0xff]
  %v406 = vld [vmem:[%s5 + $0x8] sm:$0xff]
  %v407 = vld [vmem:[%s5 + $0x10] sm:$0xff]
  %v408 = vld [vmem:[%s5 + $0x18] sm:$0xff]
  %v409 = vld [vmem:[%s5 + $0x20] sm:$0xff]
  %v410 = vld [vmem:[%s5 + $0x28] sm:$0xff]
  %v411 = vld [vmem:[%s5 + $0x30] sm:$0xff]
  %v412 = vld [vmem:[%s5 + $0x38] sm:$0xff]
  %v413 = vld [vmem:[%s5 + $0x40] sm:$0xff]
  %v414 = vld [vmem:[%s5 + $0x48] sm:$0xff]
  %v415 = vld [vmem:[%s5 + $0x50] sm:$0xff]
  %v416 = vld [vmem:[%s5 + $0x58] sm:$0xff]
  %v417 = vld [vmem:[%s5 + $0x60] sm:$0xff]
  %v418 = vld [vmem:[%s5 + $0x68] sm:$0xff]
  %v419 = vld [vmem:[%s5 + $0x70] sm:$0xff]
  %v420 = vld [vmem:[%s5 + $0x78] sm:$0xff]
  %v421 = vld [vmem:[%s5 + $0x80] sm:$0xff]
  %v422 = vld [vmem:[%s5 + $0x88] sm:$0xff]
  %v423 = vld [vmem:[%s5 + $0x90] sm:$0xff]
  %v424 = vld [vmem:[%s5 + $0x98] sm:$0xff]
  %v425 = vld [vmem:[%s5 + $0xa0] sm:$0xff]
  %v426 = vld [vmem:[%s5 + $0xa8] sm:$0xff]
  %v427 = vld [vmem:[%s5 + $0xb0] sm:$0xff]
  %v428 = vld [vmem:[%s5 + $0xb8] sm:$0xff]
  %v429 = vld [vmem:[%s5 + $0xc0] sm:$0xff]
  %v430 = vld [vmem:[%s5 + $0xc8] sm:$0xff]
  %v431 = vld [vmem:[%s5 + $0xd0] sm:$0xff]
  %v432 = vld [vmem:[%s5 + $0xd8] sm:$0xff]
  %v433 = vld [vmem:[%s5 + $0xe0] sm:$0xff]
  %v434 = vld [vmem:[%s5 + $0xe8] sm:$0xff]
  %v435 = vld [vmem:[%s5 + $0xf0] sm:$0xff]
  %v436 = vld [vmem:[%s5 + $0xf8] sm:$0xff]
  %v437 = vld [vmem:[%s6] sm:$0x3]
  %v439 = vlaneseq
  %v440 = vshrl.u32 %v439, 7
  %v441 = vsub.s32 0, %v440
  %v442 = vrot.slane %v437, %v441
  %v443 = vlaneseq
  %v444 = vshrl.u32 %v443, 7
  %v445 = vsub.s32 1, %v444
  %v446 = vrot.slane %v437, %v445
  %v481 = vunpack.c.l.b16 %v405
  %v482 = vunpack.c.h.b16 %v405
  %v483 = vunpack.c.l.b16 %v406
  %v484 = vunpack.c.h.b16 %v406
  %v485 = vunpack.c.l.b16 %v407
  %v486 = vunpack.c.h.b16 %v407
  %v487 = vunpack.c.l.b16 %v408
  %v488 = vunpack.c.h.b16 %v408
  %v489 = vunpack.c.l.b16 %v409
  %v490 = vunpack.c.h.b16 %v409
  %v491 = vunpack.c.l.b16 %v410
  %v492 = vunpack.c.h.b16 %v410
  %v493 = vunpack.c.l.b16 %v411
  %v494 = vunpack.c.h.b16 %v411
  %v495 = vunpack.c.l.b16 %v412
  %v496 = vunpack.c.h.b16 %v412
  %v497 = vunpack.c.l.b16 %v413
  %v498 = vunpack.c.h.b16 %v413
  %v499 = vunpack.c.l.b16 %v414
  %v500 = vunpack.c.h.b16 %v414
  %v501 = vunpack.c.l.b16 %v415
  %v502 = vunpack.c.h.b16 %v415
  %v503 = vunpack.c.l.b16 %v416
  %v504 = vunpack.c.h.b16 %v416
  %v505 = vunpack.c.l.b16 %v417
  %v506 = vunpack.c.h.b16 %v417
  %v507 = vunpack.c.l.b16 %v418
  %v508 = vunpack.c.h.b16 %v418
  %v509 = vunpack.c.l.b16 %v419
  %v510 = vunpack.c.h.b16 %v419
  %v511 = vunpack.c.l.b16 %v420
  %v512 = vunpack.c.h.b16 %v420
  %v513 = vunpack.c.l.b16 %v421
  %v514 = vunpack.c.h.b16 %v421
  %v515 = vunpack.c.l.b16 %v422
  %v516 = vunpack.c.h.b16 %v422
  %v517 = vunpack.c.l.b16 %v423
  %v518 = vunpack.c.h.b16 %v423
  %v519 = vunpack.c.l.b16 %v424
  %v520 = vunpack.c.h.b16 %v424
  %v521 = vunpack.c.l.b16 %v425
  %v522 = vunpack.c.h.b16 %v425
  %v523 = vunpack.c.l.b16 %v426
  %v524 = vunpack.c.h.b16 %v426
  %v525 = vunpack.c.l.b16 %v427
  %v526 = vunpack.c.h.b16 %v427
  %v527 = vunpack.c.l.b16 %v428
  %v528 = vunpack.c.h.b16 %v428
  %v529 = vunpack.c.l.b16 %v429
  %v530 = vunpack.c.h.b16 %v429
  %v531 = vunpack.c.l.b16 %v430
  %v532 = vunpack.c.h.b16 %v430
  %v533 = vunpack.c.l.b16 %v431
  %v534 = vunpack.c.h.b16 %v431
  %v535 = vunpack.c.l.b16 %v432
  %v536 = vunpack.c.h.b16 %v432
  %v537 = vunpack.c.l.b16 %v433
  %v538 = vunpack.c.h.b16 %v433
  %v539 = vunpack.c.l.b16 %v434
  %v540 = vunpack.c.h.b16 %v434
  %v541 = vunpack.c.l.b16 %v435
  %v542 = vunpack.c.h.b16 %v435
  %v543 = vunpack.c.l.b16 %v436
  %v544 = vunpack.c.h.b16 %v436
  %v545 = vpack.c.b16 %v483, %v481
  %v546 = vpack.c.b16 %v484, %v482
  %v547 = vpack.c.b16 %v487, %v485
  %v548 = vpack.c.b16 %v488, %v486
  %v549 = vpack.c.b16 %v491, %v489
  %v550 = vpack.c.b16 %v492, %v490
  %v551 = vpack.c.b16 %v495, %v493
  %v552 = vpack.c.b16 %v496, %v494
  %v553 = vpack.c.b16 %v499, %v497
  %v554 = vpack.c.b16 %v500, %v498
  %v555 = vpack.c.b16 %v503, %v501
  %v556 = vpack.c.b16 %v504, %v502
  %v557 = vpack.c.b16 %v507, %v505
  %v558 = vpack.c.b16 %v508, %v506
  %v559 = vpack.c.b16 %v511, %v509
  %v560 = vpack.c.b16 %v512, %v510
  %v561 = vpack.c.b16 %v515, %v513
  %v562 = vpack.c.b16 %v516, %v514
  %v563 = vpack.c.b16 %v519, %v517
  %v564 = vpack.c.b16 %v520, %v518
  %v565 = vpack.c.b16 %v523, %v521
  %v566 = vpack.c.b16 %v524, %v522
  %v567 = vpack.c.b16 %v527, %v525
  %v568 = vpack.c.b16 %v528, %v526
  %v569 = vpack.c.b16 %v531, %v529
  %v570 = vpack.c.b16 %v532, %v530
  %v571 = vpack.c.b16 %v535, %v533
  %v572 = vpack.c.b16 %v536, %v534
  %v573 = vpack.c.b16 %v539, %v537
  %v574 = vpack.c.b16 %v540, %v538
  %v575 = vpack.c.b16 %v543, %v541
  %v576 = vpack.c.b16 %v544, %v542
  %609 = vmatprep.subr.bf16.mxu0 %v546
  %610 = vmatpush1.bf16.msra.mxu0 %v545
  %611 = vmatprep.subr.bf16.mxu0 %v548
  %612 = vmatpush1.bf16.msra.mxu0 %v547
  %613 = vmatprep.subr.bf16.mxu0 %v550
  %614 = vmatpush1.bf16.msra.mxu0 %v549
  %615 = vmatprep.subr.bf16.mxu0 %v552
  %616 = vmatpush1.bf16.msra.mxu0 %v551
  %617 = vmatprep.subr.bf16.mxu0 %v554
  %618 = vmatpush1.bf16.msra.mxu0 %v553
  %619 = vmatprep.subr.bf16.mxu0 %v556
  %620 = vmatpush1.bf16.msra.mxu0 %v555
  %621 = vmatprep.subr.bf16.mxu0 %v558
  %622 = vmatpush1.bf16.msra.mxu0 %v557
  %623 = vmatprep.subr.bf16.mxu0 %v560
  %624 = vmatpush1.bf16.msra.mxu0 %v559
  %625 = vmatprep.subr.bf16.mxu0 %v562
  %626 = vmatpush1.bf16.msra.mxu0 %v561
  %627 = vmatprep.subr.bf16.mxu0 %v564
  %628 = vmatpush1.bf16.msra.mxu0 %v563
  %629 = vmatprep.subr.bf16.mxu0 %v566
  %630 = vmatpush1.bf16.msra.mxu0 %v565
  %631 = vmatprep.subr.bf16.mxu0 %v568
  %632 = vmatpush1.bf16.msra.mxu0 %v567
  %633 = vmatprep.subr.bf16.mxu0 %v570
  %634 = vmatpush1.bf16.msra.mxu0 %v569
  %635 = vmatprep.subr.bf16.mxu0 %v572
  %636 = vmatpush1.bf16.msra.mxu0 %v571
  %637 = vmatprep.subr.bf16.mxu0 %v574
  %638 = vmatpush1.bf16.msra.mxu0 %v573
  %639 = vmatprep.subr.bf16.mxu0 %v576
  %640 = vmatpush1.bf16.msra.mxu0 %v575
  %641 = vmatprep.mubr.bf16.mxu0 %v404
  %642 = vmatmul.mubr.bf16.gmra.mrb[0].mxu0 %v403
  %v643 = vpop.f32.mrb[0].mxu0
  %v644 = vadd.f32 %v442, %v643
  %v645 = vpop.f32.mrb[0].mxu0
  %v646 = vadd.f32 %v446, %v645
  %v647 = vpop.f32.mrb[0].mxu0
  %v648 = vpop.f32.mrb[0].mxu0
  %649 = vdwg.mxu0
  %v650 = vmax.f32 %v644, 0.0
  %v651 = vmax.f32 %v646, 0.0
  %v652 = vmax.f32 %v399, 0.0
  %v653 = vmax.f32 %v400, 0.0
  %v654 = vpack.c.bf16 %v652, %v652
  %v655 = vpack.c.bf16 %v653, %v653
  %v656 = vld [vmem:[%s7] sm:$0xff]
  %v657 = vld [vmem:[%s7 + $0x8] sm:$0xff]
  %v658 = vld [vmem:[%s7 + $0x10] sm:$0xff]
  %v659 = vld [vmem:[%s7 + $0x18] sm:$0xff]
  %v660 = vld [vmem:[%s7 + $0x20] sm:$0xff]
  %v661 = vld [vmem:[%s7 + $0x28] sm:$0xff]
  %v662 = vld [vmem:[%s7 + $0x30] sm:$0xff]
  %v663 = vld [vmem:[%s7 + $0x38] sm:$0xff]
  %v664 = vld [vmem:[%s7 + $0x40] sm:$0xff]
  %v665 = vld [vmem:[%s7 + $0x48] sm:$0xff]
  %v666 = vld [vmem:[%s7 + $0x50] sm:$0xff]
  %v667 = vld [vmem:[%s7 + $0x58] sm:$0xff]
  %v668 = vld [vmem:[%s7 + $0x60] sm:$0xff]
  %v669 = vld [vmem:[%s7 + $0x68] sm:$0xff]
  %v670 = vld [vmem:[%s7 + $0x70] sm:$0xff]
  %v671 = vld [vmem:[%s7 + $0x78] sm:$0xff]
  %v672 = vld [vmem:[%s7 + $0x80] sm:$0xff]
  %v673 = vld [vmem:[%s7 + $0x88] sm:$0xff]
  %v674 = vld [vmem:[%s7 + $0x90] sm:$0xff]
  %v675 = vld [vmem:[%s7 + $0x98] sm:$0xff]
  %v676 = vld [vmem:[%s7 + $0xa0] sm:$0xff]
  %v677 = vld [vmem:[%s7 + $0xa8] sm:$0xff]
  %v678 = vld [vmem:[%s7 + $0xb0] sm:$0xff]
  %v679 = vld [vmem:[%s7 + $0xb8] sm:$0xff]
  %v680 = vld [vmem:[%s7 + $0xc0] sm:$0xff]
  %v681 = vld [vmem:[%s7 + $0xc8] sm:$0xff]
  %v682 = vld [vmem:[%s7 + $0xd0] sm:$0xff]
  %v683 = vld [vmem:[%s7 + $0xd8] sm:$0xff]
  %v684 = vld [vmem:[%s7 + $0xe0] sm:$0xff]
  %v685 = vld [vmem:[%s7 + $0xe8] sm:$0xff]
  %v686 = vld [vmem:[%s7 + $0xf0] sm:$0xff]
  %v687 = vld [vmem:[%s7 + $0xf8] sm:$0xff]
  %v688 = vld [vmem:[%s8] sm:$0x3]
  %v690 = vlaneseq
  %v691 = vshrl.u32 %v690, 7
  %v692 = vsub.s32 0, %v691
  %v693 = vrot.slane %v688, %v692
  %v694 = vlaneseq
  %v695 = vshrl.u32 %v694, 7
  %v696 = vsub.s32 1, %v695
  %v697 = vrot.slane %v688, %v696
  %v732 = vunpack.c.l.b16 %v656
  %v733 = vunpack.c.h.b16 %v656
  %v734 = vunpack.c.l.b16 %v657
  %v735 = vunpack.c.h.b16 %v657
  %v736 = vunpack.c.l.b16 %v658
  %v737 = vunpack.c.h.b16 %v658
  %v738 = vunpack.c.l.b16 %v659
  %v739 = vunpack.c.h.b16 %v659
  %v740 = vunpack.c.l.b16 %v660
  %v741 = vunpack.c.h.b16 %v660
  %v742 = vunpack.c.l.b16 %v661
  %v743 = vunpack.c.h.b16 %v661
  %v744 = vunpack.c.l.b16 %v662
  %v745 = vunpack.c.h.b16 %v662
  %v746 = vunpack.c.l.b16 %v663
  %v747 = vunpack.c.h.b16 %v663
  %v748 = vunpack.c.l.b16 %v664
  %v749 = vunpack.c.h.b16 %v664
  %v750 = vunpack.c.l.b16 %v665
  %v751 = vunpack.c.h.b16 %v665
  %v752 = vunpack.c.l.b16 %v666
  %v753 = vunpack.c.h.b16 %v666
  %v754 = vunpack.c.l.b16 %v667
  %v755 = vunpack.c.h.b16 %v667
  %v756 = vunpack.c.l.b16 %v668
  %v757 = vunpack.c.h.b16 %v668
  %v758 = vunpack.c.l.b16 %v669
  %v759 = vunpack.c.h.b16 %v669
  %v760 = vunpack.c.l.b16 %v670
  %v761 = vunpack.c.h.b16 %v670
  %v762 = vunpack.c.l.b16 %v671
  %v763 = vunpack.c.h.b16 %v671
  %v764 = vunpack.c.l.b16 %v672
  %v765 = vunpack.c.h.b16 %v672
  %v766 = vunpack.c.l.b16 %v673
  %v767 = vunpack.c.h.b16 %v673
  %v768 = vunpack.c.l.b16 %v674
  %v769 = vunpack.c.h.b16 %v674
  %v770 = vunpack.c.l.b16 %v675
  %v771 = vunpack.c.h.b16 %v675
  %v772 = vunpack.c.l.b16 %v676
  %v773 = vunpack.c.h.b16 %v676
  %v774 = vunpack.c.l.b16 %v677
  %v775 = vunpack.c.h.b16 %v677
  %v776 = vunpack.c.l.b16 %v678
  %v777 = vunpack.c.h.b16 %v678
  %v778 = vunpack.c.l.b16 %v679
  %v779 = vunpack.c.h.b16 %v679
  %v780 = vunpack.c.l.b16 %v680
  %v781 = vunpack.c.h.b16 %v680
  %v782 = vunpack.c.l.b16 %v681
  %v783 = vunpack.c.h.b16 %v681
  %v784 = vunpack.c.l.b16 %v682
  %v785 = vunpack.c.h.b16 %v682
  %v786 = vunpack.c.l.b16 %v683
  %v787 = vunpack.c.h.b16 %v683
  %v788 = vunpack.c.l.b16 %v684
  %v789 = vunpack.c.h.b16 %v684
  %v790 = vunpack.c.l.b16 %v685
  %v791 = vunpack.c.h.b16 %v685
  %v792 = vunpack.c.l.b16 %v686
  %v793 = vunpack.c.h.b16 %v686
  %v794 = vunpack.c.l.b16 %v687
  %v795 = vunpack.c.h.b16 %v687
  %v796 = vpack.c.b16 %v734, %v732
  %v797 = vpack.c.b16 %v735, %v733
  %v798 = vpack.c.b16 %v738, %v736
  %v799 = vpack.c.b16 %v739, %v737
  %v800 = vpack.c.b16 %v742, %v740
  %v801 = vpack.c.b16 %v743, %v741
  %v802 = vpack.c.b16 %v746, %v744
  %v803 = vpack.c.b16 %v747, %v745
  %v804 = vpack.c.b16 %v750, %v748
  %v805 = vpack.c.b16 %v751, %v749
  %v806 = vpack.c.b16 %v754, %v752
  %v807 = vpack.c.b16 %v755, %v753
  %v808 = vpack.c.b16 %v758, %v756
  %v809 = vpack.c.b16 %v759, %v757
  %v810 = vpack.c.b16 %v762, %v760
  %v811 = vpack.c.b16 %v763, %v761
  %v812 = vpack.c.b16 %v766, %v764
  %v813 = vpack.c.b16 %v767, %v765
  %v814 = vpack.c.b16 %v770, %v768
  %v815 = vpack.c.b16 %v771, %v769
  %v816 = vpack.c.b16 %v774, %v772
  %v817 = vpack.c.b16 %v775, %v773
  %v818 = vpack.c.b16 %v778, %v776
  %v819 = vpack.c.b16 %v779, %v777
  %v820 = vpack.c.b16 %v782, %v780
  %v821 = vpack.c.b16 %v783, %v781
  %v822 = vpack.c.b16 %v786, %v784
  %v823 = vpack.c.b16 %v787, %v785
  %v824 = vpack.c.b16 %v790, %v788
  %v825 = vpack.c.b16 %v791, %v789
  %v826 = vpack.c.b16 %v794, %v792
  %v827 = vpack.c.b16 %v795, %v793
  %860 = vmatprep.subr.bf16.mxu0 %v797
  %861 = vmatpush1.bf16.msra.mxu0 %v796
  %862 = vmatprep.subr.bf16.mxu0 %v799
  %863 = vmatpush1.bf16.msra.mxu0 %v798
  %864 = vmatprep.subr.bf16.mxu0 %v801
  %865 = vmatpush1.bf16.msra.mxu0 %v800
  %866 = vmatprep.subr.bf16.mxu0 %v803
  %867 = vmatpush1.bf16.msra.mxu0 %v802
  %868 = vmatprep.subr.bf16.mxu0 %v805
  %869 = vmatpush1.bf16.msra.mxu0 %v804
  %870 = vmatprep.subr.bf16.mxu0 %v807
  %871 = vmatpush1.bf16.msra.mxu0 %v806
  %872 = vmatprep.subr.bf16.mxu0 %v809
  %873 = vmatpush1.bf16.msra.mxu0 %v808
  %874 = vmatprep.subr.bf16.mxu0 %v811
  %875 = vmatpush1.bf16.msra.mxu0 %v810
  %876 = vmatprep.subr.bf16.mxu0 %v813
  %877 = vmatpush1.bf16.msra.mxu0 %v812
  %878 = vmatprep.subr.bf16.mxu0 %v815
  %879 = vmatpush1.bf16.msra.mxu0 %v814
  %880 = vmatprep.subr.bf16.mxu0 %v817
  %881 = vmatpush1.bf16.msra.mxu0 %v816
  %882 = vmatprep.subr.bf16.mxu0 %v819
  %883 = vmatpush1.bf16.msra.mxu0 %v818
  %884 = vmatprep.subr.bf16.mxu0 %v821
  %885 = vmatpush1.bf16.msra.mxu0 %v820
  %886 = vmatprep.subr.bf16.mxu0 %v823
  %887 = vmatpush1.bf16.msra.mxu0 %v822
  %888 = vmatprep.subr.bf16.mxu0 %v825
  %889 = vmatpush1.bf16.msra.mxu0 %v824
  %890 = vmatprep.subr.bf16.mxu0 %v827
  %891 = vmatpush1.bf16.msra.mxu0 %v826
  %892 = vmatprep.mubr.bf16.mxu0 %v655
  %893 = vmatmul.mubr.bf16.gmra.mrb[0].mxu0 %v654
  %v894 = vpop.f32.mrb[0].mxu0
  %v895 = vadd.f32 %v693, %v894
  %v896 = vpop.f32.mrb[0].mxu0
  %v897 = vadd.f32 %v697, %v896
  %v898 = vpop.f32.mrb[0].mxu0
  %v899 = vpop.f32.mrb[0].mxu0
  %900 = vdwg.mxu0
  %v901 = vmax.f32 %v895, 0.0
  %v902 = vmax.f32 %v897, 0.0
  %v903 = vmax.f32 %v281, 0.0
  %v904 = vmax.f32 %v283, 0.0
  %v905 = vpack.c.bf16 %v903, %v903
  %v906 = vpack.c.bf16 %v904, %v904
  %v907 = vld [vmem:[%s9] sm:$0xff]
  %v908 = vld [vmem:[%s9 + $0x8] sm:$0xff]
  %v909 = vld [vmem:[%s9 + $0x10] sm:$0xff]
  %v910 = vld [vmem:[%s9 + $0x18] sm:$0xff]
  %v911 = vld [vmem:[%s9 + $0x20] sm:$0xff]
  %v912 = vld [vmem:[%s9 + $0x28] sm:$0xff]
  %v913 = vld [vmem:[%s9 + $0x30] sm:$0xff]
  %v914 = vld [vmem:[%s9 + $0x38] sm:$0xff]
  %v915 = vld [vmem:[%s9 + $0x40] sm:$0xff]
  %v916 = vld [vmem:[%s9 + $0x48] sm:$0xff]
  %v917 = vld [vmem:[%s9 + $0x50] sm:$0xff]
  %v918 = vld [vmem:[%s9 + $0x58] sm:$0xff]
  %v919 = vld [vmem:[%s9 + $0x60] sm:$0xff]
  %v920 = vld [vmem:[%s9 + $0x68] sm:$0xff]
  %v921 = vld [vmem:[%s9 + $0x70] sm:$0xff]
  %v922 = vld [vmem:[%s9 + $0x78] sm:$0xff]
  %v923 = vld [vmem:[%s9 + $0x80] sm:$0xff]
  %v924 = vld [vmem:[%s9 + $0x88] sm:$0xff]
  %v925 = vld [vmem:[%s9 + $0x90] sm:$0xff]
  %v926 = vld [vmem:[%s9 + $0x98] sm:$0xff]
  %v927 = vld [vmem:[%s9 + $0xa0] sm:$0xff]
  %v928 = vld [vmem:[%s9 + $0xa8] sm:$0xff]
  %v929 = vld [vmem:[%s9 + $0xb0] sm:$0xff]
  %v930 = vld [vmem:[%s9 + $0xb8] sm:$0xff]
  %v931 = vld [vmem:[%s9 + $0xc0] sm:$0xff]
  %v932 = vld [vmem:[%s9 + $0xc8] sm:$0xff]
  %v933 = vld [vmem:[%s9 + $0xd0] sm:$0xff]
  %v934 = vld [vmem:[%s9 + $0xd8] sm:$0xff]
  %v935 = vld [vmem:[%s9 + $0xe0] sm:$0xff]
  %v936 = vld [vmem:[%s9 + $0xe8] sm:$0xff]
  %v937 = vld [vmem:[%s9 + $0xf0] sm:$0xff]
  %v938 = vld [vmem:[%s9 + $0xf8] sm:$0xff]
  %v939 = vld [vmem:[%s10] sm:$0x3]
  %v941 = vlaneseq
  %v942 = vshrl.u32 %v941, 7
  %v943 = vsub.s32 0, %v942
  %v944 = vrot.slane %v939, %v943
  %v945 = vlaneseq
  %v946 = vshrl.u32 %v945, 7
  %v947 = vsub.s32 1, %v946
  %v948 = vrot.slane %v939, %v947
  %v983 = vunpack.c.l.b16 %v907
  %v984 = vunpack.c.h.b16 %v907
  %v985 = vunpack.c.l.b16 %v908
  %v986 = vunpack.c.h.b16 %v908
  %v987 = vunpack.c.l.b16 %v909
  %v988 = vunpack.c.h.b16 %v909
  %v989 = vunpack.c.l.b16 %v910
  %v990 = vunpack.c.h.b16 %v910
  %v991 = vunpack.c.l.b16 %v911
  %v992 = vunpack.c.h.b16 %v911
  %v993 = vunpack.c.l.b16 %v912
  %v994 = vunpack.c.h.b16 %v912
  %v995 = vunpack.c.l.b16 %v913
  %v996 = vunpack.c.h.b16 %v913
  %v997 = vunpack.c.l.b16 %v914
  %v998 = vunpack.c.h.b16 %v914
  %v999 = vunpack.c.l.b16 %v915
  %v1000 = vunpack.c.h.b16 %v915
  %v1001 = vunpack.c.l.b16 %v916
  %v1002 = vunpack.c.h.b16 %v916
  %v1003 = vunpack.c.l.b16 %v917
  %v1004 = vunpack.c.h.b16 %v917
  %v1005 = vunpack.c.l.b16 %v918
  %v1006 = vunpack.c.h.b16 %v918
  %v1007 = vunpack.c.l.b16 %v919
  %v1008 = vunpack.c.h.b16 %v919
  %v1009 = vunpack.c.l.b16 %v920
  %v1010 = vunpack.c.h.b16 %v920
  %v1011 = vunpack.c.l.b16 %v921
  %v1012 = vunpack.c.h.b16 %v921
  %v1013 = vunpack.c.l.b16 %v922
  %v1014 = vunpack.c.h.b16 %v922
  %v1015 = vunpack.c.l.b16 %v923
  %v1016 = vunpack.c.h.b16 %v923
  %v1017 = vunpack.c.l.b16 %v924
  %v1018 = vunpack.c.h.b16 %v924
  %v1019 = vunpack.c.l.b16 %v925
  %v1020 = vunpack.c.h.b16 %v925
  %v1021 = vunpack.c.l.b16 %v926
  %v1022 = vunpack.c.h.b16 %v926
  %v1023 = vunpack.c.l.b16 %v927
  %v1024 = vunpack.c.h.b16 %v927
  %v1025 = vunpack.c.l.b16 %v928
  %v1026 = vunpack.c.h.b16 %v928
  %v1027 = vunpack.c.l.b16 %v929
  %v1028 = vunpack.c.h.b16 %v929
  %v1029 = vunpack.c.l.b16 %v930
  %v1030 = vunpack.c.h.b16 %v930
  %v1031 = vunpack.c.l.b16 %v931
  %v1032 = vunpack.c.h.b16 %v931
  %v1033 = vunpack.c.l.b16 %v932
  %v1034 = vunpack.c.h.b16 %v932
  %v1035 = vunpack.c.l.b16 %v933
  %v1036 = vunpack.c.h.b16 %v933
  %v1037 = vunpack.c.l.b16 %v934
  %v1038 = vunpack.c.h.b16 %v934
  %v1039 = vunpack.c.l.b16 %v935
  %v1040 = vunpack.c.h.b16 %v935
  %v1041 = vunpack.c.l.b16 %v936
  %v1042 = vunpack.c.h.b16 %v936
  %v1043 = vunpack.c.l.b16 %v937
  %v1044 = vunpack.c.h.b16 %v937
  %v1045 = vunpack.c.l.b16 %v938
  %v1046 = vunpack.c.h.b16 %v938
  %v1047 = vpack.c.b16 %v985, %v983
  %v1048 = vpack.c.b16 %v986, %v984
  %v1049 = vpack.c.b16 %v989, %v987
  %v1050 = vpack.c.b16 %v990, %v988
  %v1051 = vpack.c.b16 %v993, %v991
  %v1052 = vpack.c.b16 %v994, %v992
  %v1053 = vpack.c.b16 %v997, %v995
  %v1054 = vpack.c.b16 %v998, %v996
  %v1055 = vpack.c.b16 %v1001, %v999
  %v1056 = vpack.c.b16 %v1002, %v1000
  %v1057 = vpack.c.b16 %v1005, %v1003
  %v1058 = vpack.c.b16 %v1006, %v1004
  %v1059 = vpack.c.b16 %v1009, %v1007
  %v1060 = vpack.c.b16 %v1010, %v1008
  %v1061 = vpack.c.b16 %v1013, %v1011
  %v1062 = vpack.c.b16 %v1014, %v1012
  %v1063 = vpack.c.b16 %v1017, %v1015
  %v1064 = vpack.c.b16 %v1018, %v1016
  %v1065 = vpack.c.b16 %v1021, %v1019
  %v1066 = vpack.c.b16 %v1022, %v1020
  %v1067 = vpack.c.b16 %v1025, %v1023
  %v1068 = vpack.c.b16 %v1026, %v1024
  %v1069 = vpack.c.b16 %v1029, %v1027
  %v1070 = vpack.c.b16 %v1030, %v1028
  %v1071 = vpack.c.b16 %v1033, %v1031
  %v1072 = vpack.c.b16 %v1034, %v1032
  %v1073 = vpack.c.b16 %v1037, %v1035
  %v1074 = vpack.c.b16 %v1038, %v1036
  %v1075 = vpack.c.b16 %v1041, %v1039
  %v1076 = vpack.c.b16 %v1042, %v1040
  %v1077 = vpack.c.b16 %v1045, %v1043
  %v1078 = vpack.c.b16 %v1046, %v1044
  %1111 = vmatprep.subr.bf16.mxu0 %v1048
  %1112 = vmatpush1.bf16.msra.mxu0 %v1047
  %1113 = vmatprep.subr.bf16.mxu0 %v1050
  %1114 = vmatpush1.bf16.msra.mxu0 %v1049
  %1115 = vmatprep.subr.bf16.mxu0 %v1052
  %1116 = vmatpush1.bf16.msra.mxu0 %v1051
  %1117 = vmatprep.subr.bf16.mxu0 %v1054
  %1118 = vmatpush1.bf16.msra.mxu0 %v1053
  %1119 = vmatprep.subr.bf16.mxu0 %v1056
  %1120 = vmatpush1.bf16.msra.mxu0 %v1055
  %1121 = vmatprep.subr.bf16.mxu0 %v1058
  %1122 = vmatpush1.bf16.msra.mxu0 %v1057
  %1123 = vmatprep.subr.bf16.mxu0 %v1060
  %1124 = vmatpush1.bf16.msra.mxu0 %v1059
  %1125 = vmatprep.subr.bf16.mxu0 %v1062
  %1126 = vmatpush1.bf16.msra.mxu0 %v1061
  %1127 = vmatprep.subr.bf16.mxu0 %v1064
  %1128 = vmatpush1.bf16.msra.mxu0 %v1063
  %1129 = vmatprep.subr.bf16.mxu0 %v1066
  %1130 = vmatpush1.bf16.msra.mxu0 %v1065
  %1131 = vmatprep.subr.bf16.mxu0 %v1068
  %1132 = vmatpush1.bf16.msra.mxu0 %v1067
  %1133 = vmatprep.subr.bf16.mxu0 %v1070
  %1134 = vmatpush1.bf16.msra.mxu0 %v1069
  %1135 = vmatprep.subr.bf16.mxu0 %v1072
  %1136 = vmatpush1.bf16.msra.mxu0 %v1071
  %1137 = vmatprep.subr.bf16.mxu0 %v1074
  %1138 = vmatpush1.bf16.msra.mxu0 %v1073
  %1139 = vmatprep.subr.bf16.mxu0 %v1076
  %1140 = vmatpush1.bf16.msra.mxu0 %v1075
  %1141 = vmatprep.subr.bf16.mxu0 %v1078
  %1142 = vmatpush1.bf16.msra.mxu0 %v1077
  %1143 = vmatprep.mubr.bf16.mxu0 %v906
  %1144 = vmatmul.mubr.bf16.gmra.mrb[0].mxu0 %v905
  %v1145 = vpop.f32.mrb[0].mxu0
  %v1146 = vadd.f32 %v944, %v1145
  %v1147 = vpop.f32.mrb[0].mxu0
  %v1148 = vadd.f32 %v948, %v1147
  %v1149 = vpop.f32.mrb[0].mxu0
  %v1150 = vpop.f32.mrb[0].mxu0
  %1151 = vdwg.mxu0
  %v1152 = vmax.f32 %v1146, 0.0
  %v1153 = vmax.f32 %v1148, 0.0
  %v1154 = vld [vmem:[%s11] sm:$0x3]
  %v1156 = vlaneseq
  %v1157 = vshrl.u32 %v1156, 7
  %v1158 = vsub.s32 0, %v1157
  %v1159 = vrot.slane %v1154, %v1158
  %v1160 = vlaneseq
  %v1161 = vshrl.u32 %v1160, 7
  %v1162 = vsub.s32 1, %v1161
  %v1163 = vrot.slane %v1154, %v1162
  %v1166 = vmul.f32 %v650, %v1159
  %v1167 = vmul.f32 %v651, %v1163
  %v1168 = vadd.f32 %v1166, %v1167
  %1169 = vadd.xlane.f32.xlu0 %v1168
  %v1170 = vpop.xlane.xlu0 %1169
  %v1171 = vld [vmem:[%s12] sm:$0x3]
  %v1173 = vlaneseq
  %v1174 = vshrl.u32 %v1173, 7
  %v1175 = vsub.s32 0, %v1174
  %v1176 = vrot.slane %v1171, %v1175
  %v1177 = vlaneseq
  %v1178 = vshrl.u32 %v1177, 7
  %v1179 = vsub.s32 1, %v1178
  %v1180 = vrot.slane %v1171, %v1179
  %v1183 = vmul.f32 %v901, %v1176
  %v1184 = vmul.f32 %v902, %v1180
  %v1185 = vadd.f32 %v1183, %v1184
  %1186 = vadd.xlane.f32.xlu0 %v1185
  %v1187 = vpop.xlane.xlu0 %1186
  %v1188 = vld [vmem:[%s13] sm:$0x3]
  %v1190 = vlaneseq
  %v1191 = vshrl.u32 %v1190, 7
  %v1192 = vsub.s32 0, %v1191
  %v1193 = vrot.slane %v1188, %v1192
  %v1194 = vlaneseq
  %v1195 = vshrl.u32 %v1194, 7
  %v1196 = vsub.s32 1, %v1195
  %v1197 = vrot.slane %v1188, %v1196
  %v1200 = vmul.f32 %v1152, %v1193
  %v1201 = vmul.f32 %v1153, %v1197
  %v1202 = vadd.f32 %v1200, %v1201
  %1203 = vadd.xlane.f32.xlu0 %v1202
  %v1204 = vpop.xlane.xlu0 %1203
  %v1205 = vlaneseq
  %v1206 = vand.u32 %v1205, 127
  %vm1207 = vcmp.eq.s32.totalorder %v1206, 0
  %vm1208 = vcmp.eq.s32.totalorder %v1206, 1
  %vm1209 = vcmp.eq.s32.totalorder %v1206, 2
  %v1210 = vsel %vm1209, %v1204, 0.0
  %v1211 = vsel %vm1208, %v1187, %v1210
  %v1212 = vsel %vm1207, %v1170, %v1211
  %v1213 = vld [vmem:[%s14] sm:$0x1]
  %v1215 = vlaneseq
  %v1216 = vshrl.u32 %v1215, 7
  %v1217 = vsub.s32 0, %v1216
  %v1218 = vrot.slane %v1213, %v1217
  %v1220 = vadd.f32 %v1212, %v1218
  %1221 = vst [vmem:[%s15] sm:$0xff] %v1220
  // Predicated region
  $region62: #{critic_forward.1} parent=0 // pred_check
    _
  $region63: #{critic_forward.1} parent=0 // pred_check_branch
    %1223 = sbr.rel (0) target = $region65
  $region64: #{critic_forward.1} parent=0 // pred_region
    _
  $region65: #{critic_forward.1} parent=0 // pred_fallthru
    _
  // Predicated region
  $region66: #{critic_forward.1} parent=0 // pred_check
    _
  $region67: #{critic_forward.1} parent=0 // pred_check_branch
    %1225 = sbr.rel (0) target = $region69
  $region68: #{critic_forward.1} parent=0 // pred_region
    _
  $region69: #{critic_forward.1} parent=0 // pred_fallthru
    _

</llo_original>
